<compile_context>
chip_gen: v6e
topology: v6e:2x2x1
jax: 0.10.0
libtpu: 0.0.40
codegen_flags: <defaults>
</compile_context>

<pallas_src>
import math

import numpy as np

import jax
import jax.numpy as jnp
from jax.experimental import pallas as pl
from jax.experimental.pallas import tpu as pltpu

# ----------------------------- config -------------------------------------
LATENT_DIM = 8            # stands in for vq_layer.embedding_dim
HIDDEN_DIM = 64           # UNet(hidden_dim=64) in the reference
MOTION_CH = 2             # EventGAN motion-map channels
UNET_CIN = 3 * LATENT_DIM + 2 * MOTION_CH   # 28 = [z_t, z_0, z_+1, m_01, m_12]
MAX_DIFFUSION_STEPS = 1000
BETA_START = 1e-4
BETA_END = 0.02

# Diffusion schedule hoisted to module-level constants (matches
# torch.linspace / cumprod / sqrt in the reference __init__).
_BETAS = np.linspace(BETA_START, BETA_END, MAX_DIFFUSION_STEPS, dtype=np.float32)
_ALPHAS_CUMPROD = np.cumprod(1.0 - _BETAS).astype(np.float32)
_SQRT_AC = np.sqrt(_ALPHAS_CUMPROD).astype(np.float32)
_SQRT_1M_AC = np.sqrt(1.0 - _ALPHAS_CUMPROD).astype(np.float32)


# --------------------------- fused Pallas kernel ----------------------------
def _madiff_fused_kernel(
    coef_ref,                 # SMEM (2, B): [sqrt_ac_t ; sqrt_1m_ac_t]
    rgb_ref,                  # VMEM (1, 9, T) f32: [I_-1 | I_0 | I_+1] channels
    eps_ref,                  # VMEM (1, LATENT, T) f32
    bias1_ref,                # VMEM (1, HIDDEN, 1) f32: u_b1 + temb + motion bias
    encw_ref, encb_ref,       # (2*LATENT, 9) f32, (2*LATENT, 1) f32
    w1z_ref, w1rgb_ref,       # (HIDDEN, 3*LATENT) bf16, (HIDDEN, 9) bf16
    w2_ref, b2_ref,           # (LATENT, HIDDEN) bf16, (LATENT, 1) f32
    out_ref,                  # VMEM (1, LATENT, T) f32
):
    f32 = jnp.float32
    bf16 = jnp.bfloat16
    b = pl.program_id(0)

    rgb = rgb_ref[0]                                           # (9, T) f32

    # --- encoder stand-in (1x1 conv) on I_0 and I_+1 in ONE MXU pass --------
    # encw is block-placed so rows 0:8 see I_0's channels and rows 8:16 see
    # I_+1's channels of the stacked RGB block.
    z01 = jnp.dot(encw_ref[...], rgb, preferred_element_type=f32) + encb_ref[...]
    z_0 = z01[0:LATENT_DIM, :]                                 # (L, T)
    # z_minus1 is encoded in the reference but never consumed by the UNet ->
    # dead work, skipped.

    # --- forward-diffusion q-sample (coefs from SMEM scalars) ----------------
    sa = coef_ref[0, b]
    sb = coef_ref[1, b]
    z_t = sa * z_0 + sb * eps_ref[0]                           # (L, T)

    # --- denoising UNet layer 1 ----------------------------------------------
    # Single concatenated-K matmul over [z_t, z_0, z_+1] (one bf16 cast), plus
    # a folded gray+eventgan+motion-column matmul applied straight to the
    # stacked RGB block (no gray / motion-map intermediates).  Per-batch
    # timestep embedding + biases arrive pre-fused as bias1.
    feat = jnp.concatenate([z_t, z01], axis=0).astype(bf16)    # (3L, T)
    h = (jnp.dot(w1z_ref[...], feat, preferred_element_type=f32)
         + jnp.dot(w1rgb_ref[...], rgb.astype(bf16), preferred_element_type=f32)
         + bias1_ref[0])                                       # (HIDDEN, T)
    h = jnp.maximum(h, 0.0)

    # --- UNet layer 2 -> predicted noise (lane-dense store) ------------------
    pred = (jnp.dot(w2_ref[...], h.astype(bf16), preferred_element_type=f32)
            + b2_ref[...])                                     # (L, T)
    out_ref[0] = pred.astype(out_ref.dtype)


# ------------------------------- wrappers -----------------------------------
_TILE_CANDIDATES = (16384, 8192, 4096, 2048)


def _round_up(x, m):
    return (x + m - 1) // m * m


def _choose_hw_tile(hw):
    """Large lane-dense tile; pixel axis is padded up to a multiple of it."""
    hw128 = _round_up(hw, 128)
    if hw128 <= _TILE_CANDIDATES[0]:
        return hw128                       # whole (padded) image in one tile
    for t in _TILE_CANDIDATES:
        pad = _round_up(hw, t) - hw
        if pad * 8 <= hw:                  # keep padding overhead <= 12.5%
            return t
    return _TILE_CANDIDATES[-1]


def _full_spec(shape):
    n = len(shape)
    return pl.BlockSpec(shape, lambda *args, _n=n: (0,) * _n)


def madiff_forward(params, I_minus1, I_0, I_plus1, t, epsilon):
    """Returns (predicted_noise, epsilon), both NCHW (B, LATENT_DIM, H, W)."""
    B, C, H, W = I_0.shape
    assert C == 3, "MADiff expects RGB frames"
    HW = H * W
    T = _choose_hw_tile(HW)
    HW_pad = _round_up(HW, T)
    n_hw = HW_pad // T

    f32, bf16 = jnp.float32, jnp.bfloat16
    L, Mc = LATENT_DIM, MOTION_CH

    # --- stacked channel-in-sublane / pixel-in-lane inputs, padded on lanes --
    rgb9 = jnp.concatenate(
        [I_minus1.reshape(B, C, HW), I_0.reshape(B, C, HW),
         I_plus1.reshape(B, C, HW)], axis=1)                   # (B, 9, HW)
    eps = epsilon.reshape(B, L, HW)
    if HW_pad != HW:
        pad = HW_pad - HW
        rgb9 = jnp.pad(rgb9, ((0, 0), (0, 0), (0, pad)))
        eps = jnp.pad(eps, ((0, 0), (0, 0), (0, pad)))

    # --- diffusion-schedule lookup -> (2, B) SMEM scalars ---------------------
    coef = jnp.stack(
        [jnp.asarray(_SQRT_AC)[t], jnp.asarray(_SQRT_1M_AC)[t]], axis=0
    ).astype(f32)

    # --- timestep-embedding MLP hoisted out of the kernel (batch-only work) ---
    half = HIDDEN_DIM // 2
    freqs = jnp.exp(-math.log(10000.0) * jnp.arange(half, dtype=f32) / half)
    args = t.astype(f32)[:, None] * freqs[None, :]
    emb = jnp.concatenate([jnp.sin(args), jnp.cos(args)], axis=-1)      # (B, H)
    temb = jax.nn.silu(emb @ params["t_wT"].T + params["t_bT"][:, 0])   # (B, H)

    # --- fold tiny weights once (wrapper-side; negligible XLA work) -----------
    enc_w, enc_b = params["enc_wT"], params["enc_bT"]
    ev_w, ev_b = params["ev_wT"], params["ev_bT"]
    u_w1, u_b1 = params["u_w1T"], params["u_b1T"]
    u_w2, u_b2 = params["u_w2T"], params["u_b2T"]

    # gray conversion + eventgan + UNet-layer-1 motion columns folded into one
    # (HIDDEN, 9) matrix applied directly to the stacked RGB block.
    w1_m01 = u_w1[:, 3 * L:3 * L + Mc]
    w1_m12 = u_w1[:, 3 * L + Mc:3 * L + 2 * Mc]
    gray = jnp.array([[0.299, 0.587, 0.114]], f32)             # (1, 3)
    a_m1 = w1_m01 @ ev_w[:, 0:1]                               # (HIDDEN, 1)
    a_0 = w1_m01 @ ev_w[:, 1:2] + w1_m12 @ ev_w[:, 0:1]
    a_p1 = w1_m12 @ ev_w[:, 1:2]
    w1_rgb = jnp.concatenate([a_m1 @ gray, a_0 @ gray, a_p1 @ gray],
                             axis=1).astype(bf16)              # (HIDDEN, 9)
    bias_motion = (w1_m01 + w1_m12) @ ev_b                     # (HIDDEN, 1)

    # per-batch fused layer-1 bias: u_b1 + temb + motion bias
    bias1 = (temb + u_b1[:, 0][None, :] + bias_motion[:, 0][None, :])
    bias1 = bias1.astype(f32).reshape(B, HIDDEN_DIM, 1)

    # encoder applied to I_0 and I_+1 in one MXU pass: (16, 9) block placement
    enc_big_w = jnp.zeros((2 * L, 3 * C), f32)
    enc_big_w = enc_big_w.at[0:L, 3:6].set(enc_w)
    enc_big_w = enc_big_w.at[L:2 * L, 6:9].set(enc_w)
    enc_big_b = jnp.concatenate([enc_b, enc_b], axis=0)        # (16, 1)

    w1_z = u_w1[:, 0:3 * L].astype(bf16)                       # (HIDDEN, 24)
    w2 = u_w2.astype(bf16)                                     # (LATENT, HIDDEN)

    weights = (enc_big_w, enc_big_b, w1_z, w1_rgb, w2, u_b2)

    frame_spec = pl.BlockSpec((1, 3 * C, T), lambda b, h, *_: (b, 0, h))
    eps_spec = pl.BlockSpec((1, L, T), lambda b, h, *_: (b, 0, h))
    bias_spec = pl.BlockSpec((1, HIDDEN_DIM, 1), lambda b, h, *_: (b, 0, 0))
    out_spec = pl.BlockSpec((1, L, T), lambda b, h, *_: (b, 0, h))

    pred_flat = pl.pallas_call(
        _madiff_fused_kernel,
        out_shape=jax.ShapeDtypeStruct((B, L, HW_pad), f32),
        grid_spec=pltpu.PrefetchScalarGridSpec(
            num_scalar_prefetch=1,
            grid=(B, n_hw),
            in_specs=[frame_spec, eps_spec, bias_spec]
                     + [_full_spec(w.shape) for w in weights],
            out_specs=out_spec,
        ),
        compiler_params=pltpu.CompilerParams(
            dimension_semantics=("parallel", "parallel"),
            vmem_limit_bytes=32 * 1024 * 1024,
        ),
    )(coef, rgb9, eps, bias1, *weights)

    predicted_noise = pred_flat[:, :, :HW].reshape(B, L, H, W)
    # TODO(synk): F.interpolate branch for shape-mismatched epsilon is skipped;
    # predicted_noise and epsilon always share shapes in this configuration.
    return predicted_noise, epsilon


# --------------------------- parameter setup --------------------------------
def init_params(key):
    ks = jax.random.split(key, 5)
    s = 0.1
    return {
        # encoder: 1x1 conv RGB -> latent (transposed: channels-out in sublane)
        "enc_wT": s * jax.random.normal(ks[0], (LATENT_DIM, 3), jnp.float32),
        "enc_bT": jnp.zeros((LATENT_DIM, 1), jnp.float32),
        # eventgan: 1x1 conv on 2-channel gray pair -> motion map
        "ev_wT": s * jax.random.normal(ks[1], (MOTION_CH, 2), jnp.float32),
        "ev_bT": jnp.zeros((MOTION_CH, 1), jnp.float32),
        # timestep-embedding linear (out, in)
        "t_wT": s * jax.random.normal(ks[2], (HIDDEN_DIM, HIDDEN_DIM), jnp.float32),
        "t_bT": jnp.zeros((HIDDEN_DIM, 1), jnp.float32),
        # denoising UNet (fused 2-layer 1x1-conv MLP); cast to bf16 in wrapper
        "u_w1T": s * jax.random.normal(ks[3], (HIDDEN_DIM, UNET_CIN), jnp.float32),
        "u_b1T": jnp.zeros((HIDDEN_DIM, 1), jnp.float32),
        "u_w2T": s * jax.random.normal(ks[4], (LATENT_DIM, HIDDEN_DIM), jnp.float32),
        "u_b2T": jnp.zeros((LATENT_DIM, 1), jnp.float32),
    }


# --------------------------------- main --------------------------------------
if __name__ == "__main__":
    key = jax.random.PRNGKey(0)
    k_params, k_m1, k_0, k_p1, k_eps = jax.random.split(key, 5)

    B, C, H, W = 2, 3, 16, 16
    params = init_params(k_params)

    I_minus1 = jax.random.normal(k_m1, (B, C, H, W), jnp.float32)
    I_0 = jax.random.normal(k_0, (B, C, H, W), jnp.float32)
    I_plus1 = jax.random.normal(k_p1, (B, C, H, W), jnp.float32)
    t = jnp.array([10, 500], dtype=jnp.int32)
    epsilon = jax.random.normal(k_eps, (B, LATENT_DIM, H, W), jnp.float32)

    fwd = jax.jit(madiff_forward)
    predicted_noise, eps_out = fwd(params, I_minus1, I_0, I_plus1, t, epsilon)
    jax.block_until_ready((predicted_noise, eps_out))

    assert predicted_noise.shape == (B, LATENT_DIM, H, W)
    assert eps_out.shape == (B, LATENT_DIM, H, W)
    assert bool(jnp.all(jnp.isfinite(predicted_noise)))
    print("KERNEL_OK")
</pallas_src>

<mosaic_0001>
module attributes {stable_mosaic.version = 11 : i64} {
  func.func @_madiff_fused_kernel(%arg0: i32, %arg1: i32, %arg2: memref<2x2xf32, #tpu.memory_space<smem>>, %arg3: memref<1x9x256xf32, #tpu.memory_space<vmem>>, %arg4: memref<1x8x256xf32, #tpu.memory_space<vmem>>, %arg5: memref<1x64x1xf32, #tpu.memory_space<vmem>>, %arg6: memref<16x9xf32, #tpu.memory_space<vmem>>, %arg7: memref<16x1xf32, #tpu.memory_space<vmem>>, %arg8: memref<64x24xbf16, #tpu.memory_space<vmem>>, %arg9: memref<64x9xbf16, #tpu.memory_space<vmem>>, %arg10: memref<8x64xbf16, #tpu.memory_space<vmem>>, %arg11: memref<8x1xf32, #tpu.memory_space<vmem>>, %arg12: memref<1x8x256xf32, #tpu.memory_space<vmem>>) attributes {dimension_semantics = [#tpu.dimension_semantics<parallel>, #tpu.dimension_semantics<parallel>], iteration_bounds = array<i64: 2, 1>, scalar_prefetch = 1 : i64, scratch_operands = 0 : i64, tpu.core_type = #tpu.core_type<tc>, window_params = [{transform_indices = @transform_0, window_bounds = array<i64: 1, 9, 256>}, {transform_indices = @transform_1, window_bounds = array<i64: 1, 8, 256>}, {transform_indices = @transform_2, window_bounds = array<i64: 1, 64, 1>}, {pipeline_mode = #tpu.pipeline_mode<synchronous>, transform_indices = @transform_3, window_bounds = array<i64: 16, 9>}, {pipeline_mode = #tpu.pipeline_mode<synchronous>, transform_indices = @transform_4, window_bounds = array<i64: 16, 1>}, {pipeline_mode = #tpu.pipeline_mode<synchronous>, transform_indices = @transform_5, window_bounds = array<i64: 64, 24>}, {pipeline_mode = #tpu.pipeline_mode<synchronous>, transform_indices = @transform_6, window_bounds = array<i64: 64, 9>}, {pipeline_mode = #tpu.pipeline_mode<synchronous>, transform_indices = @transform_7, window_bounds = array<i64: 8, 64>}, {pipeline_mode = #tpu.pipeline_mode<synchronous>, transform_indices = @transform_8, window_bounds = array<i64: 8, 1>}, {transform_indices = @transform_9, window_bounds = array<i64: 1, 8, 256>}]} {
    %c0 = arith.constant 0 : index
    %c0_0 = arith.constant 0 : index
    %c0_1 = arith.constant 0 : index
    %0 = vector.load %arg3[%c0, %c0_0, %c0_1] : memref<1x9x256xf32, #tpu.memory_space<vmem>>, vector<1x9x256xf32>
    %1 = vector.shape_cast %0 : vector<1x9x256xf32> to vector<9x256xf32>
    %c0_2 = arith.constant 0 : index
    %c0_3 = arith.constant 0 : index
    %2 = vector.load %arg6[%c0_2, %c0_3] : memref<16x9xf32, #tpu.memory_space<vmem>>, vector<16x9xf32>
    %cst = arith.constant dense<0.000000e+00> : vector<16x256xf32>
    %3 = tpu.matmul %2, %1, %cst {dimension_numbers = #tpu.dot_dimension_numbers<[1], [0], [0], [1], [0, 0, 1, 1], [], []>} : vector<16x9xf32>, vector<9x256xf32>, vector<16x256xf32> -> vector<16x256xf32>
    %c0_4 = arith.constant 0 : index
    %c0_5 = arith.constant 0 : index
    %4 = vector.load %arg7[%c0_4, %c0_5] : memref<16x1xf32, #tpu.memory_space<vmem>>, vector<16x1xf32>
    %5 = vector.broadcast %4 : vector<16x1xf32> to vector<16x256xf32>
    %6 = arith.addf %3, %5 : vector<16x256xf32>
    %7 = vector.extract_strided_slice %6 {offsets = [0, 0], sizes = [8, 256], strides = [1, 1]} : vector<16x256xf32> to vector<8x256xf32>
    %c0_6 = arith.constant 0 : index
    %8 = arith.index_cast %arg0 : i32 to index
    %9 = memref.load %arg2[%c0_6, %8] : memref<2x2xf32, #tpu.memory_space<smem>>
    %c1 = arith.constant 1 : index
    %10 = arith.index_cast %arg0 : i32 to index
    %11 = memref.load %arg2[%c1, %10] : memref<2x2xf32, #tpu.memory_space<smem>>
    %12 = vector.broadcast %9 : f32 to vector<8x256xf32>
    %13 = arith.mulf %12, %7 : vector<8x256xf32>
    %c0_7 = arith.constant 0 : index
    %c0_8 = arith.constant 0 : index
    %c0_9 = arith.constant 0 : index
    %14 = vector.load %arg4[%c0_7, %c0_8, %c0_9] : memref<1x8x256xf32, #tpu.memory_space<vmem>>, vector<1x8x256xf32>
    %15 = vector.shape_cast %14 : vector<1x8x256xf32> to vector<8x256xf32>
    %16 = vector.broadcast %11 : f32 to vector<8x256xf32>
    %17 = arith.mulf %16, %15 : vector<8x256xf32>
    %18 = arith.addf %13, %17 : vector<8x256xf32>
    %19 = tpu.concatenate %18, %6 in 0 : vector<8x256xf32>, vector<16x256xf32> -> vector<24x256xf32>
    %20 = arith.truncf %19 : vector<24x256xf32> to vector<24x256xbf16>
    %c0_10 = arith.constant 0 : index
    %c0_11 = arith.constant 0 : index
    %21 = vector.load %arg8[%c0_10, %c0_11] : memref<64x24xbf16, #tpu.memory_space<vmem>>, vector<64x24xbf16>
    %cst_12 = arith.constant dense<0.000000e+00> : vector<64x256xf32>
    %22 = tpu.matmul %21, %20, %cst_12 {dimension_numbers = #tpu.dot_dimension_numbers<[1], [0], [0], [1], [0, 0, 1, 1], [], []>} : vector<64x24xbf16>, vector<24x256xbf16>, vector<64x256xf32> -> vector<64x256xf32>
    %c0_13 = arith.constant 0 : index
    %c0_14 = arith.constant 0 : index
    %23 = vector.load %arg9[%c0_13, %c0_14] : memref<64x9xbf16, #tpu.memory_space<vmem>>, vector<64x9xbf16>
    %24 = arith.truncf %1 : vector<9x256xf32> to vector<9x256xbf16>
    %cst_15 = arith.constant dense<0.000000e+00> : vector<64x256xf32>
    %25 = tpu.matmul %23, %24, %cst_15 {dimension_numbers = #tpu.dot_dimension_numbers<[1], [0], [0], [1], [0, 0, 1, 1], [], []>} : vector<64x9xbf16>, vector<9x256xbf16>, vector<64x256xf32> -> vector<64x256xf32>
    %26 = arith.addf %22, %25 : vector<64x256xf32>
    %c0_16 = arith.constant 0 : index
    %c0_17 = arith.constant 0 : index
    %c0_18 = arith.constant 0 : index
    %27 = vector.load %arg5[%c0_16, %c0_17, %c0_18] : memref<1x64x1xf32, #tpu.memory_space<vmem>>, vector<1x64x1xf32>
    %28 = vector.shape_cast %27 : vector<1x64x1xf32> to vector<64x1xf32>
    %29 = vector.broadcast %28 : vector<64x1xf32> to vector<64x256xf32>
    %30 = arith.addf %26, %29 : vector<64x256xf32>
    %cst_19 = arith.constant 0.000000e+00 : f32
    %31 = vector.broadcast %cst_19 : f32 to vector<64x256xf32>
    %32 = arith.maximumf %30, %31 : vector<64x256xf32>
    %c0_20 = arith.constant 0 : index
    %c0_21 = arith.constant 0 : index
    %33 = vector.load %arg10[%c0_20, %c0_21] : memref<8x64xbf16, #tpu.memory_space<vmem>>, vector<8x64xbf16>
    %34 = arith.truncf %32 : vector<64x256xf32> to vector<64x256xbf16>
    %cst_22 = arith.constant dense<0.000000e+00> : vector<8x256xf32>
    %35 = tpu.matmul %33, %34, %cst_22 {dimension_numbers = #tpu.dot_dimension_numbers<[1], [0], [0], [1], [0, 0, 1, 1], [], []>} : vector<8x64xbf16>, vector<64x256xbf16>, vector<8x256xf32> -> vector<8x256xf32>
    %c0_23 = arith.constant 0 : index
    %c0_24 = arith.constant 0 : index
    %36 = vector.load %arg11[%c0_23, %c0_24] : memref<8x1xf32, #tpu.memory_space<vmem>>, vector<8x1xf32>
    %37 = vector.broadcast %36 : vector<8x1xf32> to vector<8x256xf32>
    %38 = arith.addf %35, %37 : vector<8x256xf32>
    %c0_25 = arith.constant 0 : index
    %c0_26 = arith.constant 0 : index
    %c0_27 = arith.constant 0 : index
    %39 = vector.load %arg12[%c0_25, %c0_26, %c0_27] : memref<1x8x256xf32, #tpu.memory_space<vmem>>, vector<1x8x256xf32>
    %40 = vector.shape_cast %39 : vector<1x8x256xf32> to vector<8x256xf32>
    %41 = vector.shape_cast %38 : vector<8x256xf32> to vector<1x8x256xf32>
    tpu.vector_store %arg12[%c0_25, %c0_26, %c0_27], %41 {strides = array<i32>} : memref<1x8x256xf32, #tpu.memory_space<vmem>>, vector<1x8x256xf32>,
    return
  }
  func.func @transform_0(%arg0: i32, %arg1: i32, %arg2: memref<2x2xf32, #tpu.memory_space<smem>>) -> (i32, i32, i32) {
    %c0_i32 = arith.constant 0 : i32
    %c0_i32_0 = arith.constant 0 : i32
    return %arg0, %c0_i32, %arg1 : i32, i32, i32
  }
  func.func @transform_1(%arg0: i32, %arg1: i32, %arg2: memref<2x2xf32, #tpu.memory_space<smem>>) -> (i32, i32, i32) {
    %c0_i32 = arith.constant 0 : i32
    %c0_i32_0 = arith.constant 0 : i32
    return %arg0, %c0_i32, %arg1 : i32, i32, i32
  }
  func.func @transform_2(%arg0: i32, %arg1: i32, %arg2: memref<2x2xf32, #tpu.memory_space<smem>>) -> (i32, i32, i32) {
    %c0_i32 = arith.constant 0 : i32
    %c0_i32_0 = arith.constant 0 : i32
    %c0_i32_1 = arith.constant 0 : i32
    return %arg0, %c0_i32, %c0_i32_0 : i32, i32, i32
  }
  func.func @transform_3(%arg0: i32, %arg1: i32, %arg2: memref<2x2xf32, #tpu.memory_space<smem>>) -> (i32, i32) {
    %c0_i32 = arith.constant 0 : i32
    %c0_i32_0 = arith.constant 0 : i32
    %c0_i32_1 = arith.constant 0 : i32
    return %c0_i32, %c0_i32_0 : i32, i32
  }
  func.func @transform_4(%arg0: i32, %arg1: i32, %arg2: memref<2x2xf32, #tpu.memory_space<smem>>) -> (i32, i32) {
    %c0_i32 = arith.constant 0 : i32
    %c0_i32_0 = arith.constant 0 : i32
    %c0_i32_1 = arith.constant 0 : i32
    return %c0_i32, %c0_i32_0 : i32, i32
  }
  func.func @transform_5(%arg0: i32, %arg1: i32, %arg2: memref<2x2xf32, #tpu.memory_space<smem>>) -> (i32, i32) {
    %c0_i32 = arith.constant 0 : i32
    %c0_i32_0 = arith.constant 0 : i32
    %c0_i32_1 = arith.constant 0 : i32
    return %c0_i32, %c0_i32_0 : i32, i32
  }
  func.func @transform_6(%arg0: i32, %arg1: i32, %arg2: memref<2x2xf32, #tpu.memory_space<smem>>) -> (i32, i32) {
    %c0_i32 = arith.constant 0 : i32
    %c0_i32_0 = arith.constant 0 : i32
    %c0_i32_1 = arith.constant 0 : i32
    return %c0_i32, %c0_i32_0 : i32, i32
  }
  func.func @transform_7(%arg0: i32, %arg1: i32, %arg2: memref<2x2xf32, #tpu.memory_space<smem>>) -> (i32, i32) {
    %c0_i32 = arith.constant 0 : i32
    %c0_i32_0 = arith.constant 0 : i32
    %c0_i32_1 = arith.constant 0 : i32
    return %c0_i32, %c0_i32_0 : i32, i32
  }
  func.func @transform_8(%arg0: i32, %arg1: i32, %arg2: memref<2x2xf32, #tpu.memory_space<smem>>) -> (i32, i32) {
    %c0_i32 = arith.constant 0 : i32
    %c0_i32_0 = arith.constant 0 : i32
    %c0_i32_1 = arith.constant 0 : i32
    return %c0_i32, %c0_i32_0 : i32, i32
  }
  func.func @transform_9(%arg0: i32, %arg1: i32, %arg2: memref<2x2xf32, #tpu.memory_space<smem>>) -> (i32, i32, i32) {
    %c0_i32 = arith.constant 0 : i32
    %c0_i32_0 = arith.constant 0 : i32
    return %arg0, %c0_i32, %arg1 : i32, i32, i32
  }
}

</mosaic_0001>

<llo_original>
// kernel: madiff_forward.1
$region0: #{madiff_forward.1}
  #allocation0 [shape = 'u32[]', space=smem, size = 0x4, offset = 0x4, fixed_abs, tag = 'smem constant byte address 0x4 - core index']
  #allocation1 [shape = 'u32[144,128]{1,0:T(1,128)}', space=vmem, size = 0x12000, scoped, tag = 'internal scratch']
  #allocation2 [shape = 's32[1]{0}', space=sflag, size = 0x4, scoped, tag = 'scoped memory for madiff_forward.1']
  #allocation3 [shape = 'u8[1024]{0}', space=smem, size = 0x400, scoped, tag = 'prefetched SMEM operand 0']
  %s0 = inlined_call_operand.vmem [shape: f32[2,2], index: 0, kind: input, shape index: {}]
  %s1 = inlined_call_operand.vmem [shape: f32[2,9,256], index: 1, kind: input, shape index: {}]
  %s2 = inlined_call_operand.vmem [shape: f32[2,8,256], index: 2, kind: input, shape index: {}]
  %s3 = inlined_call_operand.vmem [shape: f32[2,64,1], index: 3, kind: input, shape index: {}]
  %s4 = inlined_call_operand.vmem [shape: f32[16,9], index: 4, kind: input, shape index: {}]
  %s5 = inlined_call_operand.vmem [shape: f32[16,1], index: 5, kind: input, shape index: {}]
  %s6 = inlined_call_operand.vmem [shape: bf16[64,24], index: 6, kind: input, shape index: {}]
  %s7 = inlined_call_operand.vmem [shape: bf16[64,9], index: 7, kind: input, shape index: {}]
  %s8 = inlined_call_operand.vmem [shape: bf16[8,64], index: 8, kind: input, shape index: {}]
  %s9 = inlined_call_operand.vmem [shape: f32[8,1], index: 9, kind: input, shape index: {}]
  %s10 = inlined_call_operand.vmem [shape: f32[2,8,256], index: 10, kind: output, shape index: {}]
  %s11 = sld [smem:[#allocation0]]
  $region69: #{madiff_forward.1} parent=0
    _
  %s13 = ssub.s32 1, %s11
  %s14 = scalar_select 0, %s13, %s11
  %s15 = sshll.u32 %s0, 4
  %s16 = int_to_ptr.vmem [resolvable:$true] %s15
  %18 = dma.vmem_to_smem %s16, 32, [#allocation3], [#allocation2]
  %19 = dma.done [#allocation2], 32
  %20 = sfence
  loop: start=0, step=1, limit=4
  $region2: #{madiff_forward.1} parent=0 // loop_pre_header
    _
  $region3: #{madiff_forward.1} parent=0 // loop_header
    %s22 = sphi 0, %s26
    %p23 = scmp.ge.s32.totalorder %s22, 4
    %s29 = sphi 0, %s41
    %s30 = sphi 0, %s37
    %s31 = sphi 0, %s29
    %s32 = sphi 0, %s30
    %s33 = sphi 0, %s31
    %s34 = sphi 0, %s32
    %s46 = sphi 0, %s48
    %s49 = sphi 0, %s46
    %s50 = sphi 0, %s49
    %s66 = sphi 0, %s50
    %s74 = sphi 0, %s76
    %s77 = sphi 0, %s74
    %s78 = sphi 0, %s77
    %s94 = sphi 0, %s78
    %s100 = sphi 0, %s102
    %s103 = sphi 0, %s100
    %s104 = sphi 0, %s103
    %s120 = sphi 0, %s104
    %s124 = sphi 0, %s124
    %s126 = sphi 0, %s124
    %s127 = sphi 0, %s126
    %s141 = sphi 0, %s127
    %s145 = sphi 0, %s145
    %s147 = sphi 0, %s145
    %s148 = sphi 0, %s147
    %s162 = sphi 0, %s148
    %s166 = sphi 0, %s166
    %s168 = sphi 0, %s166
    %s169 = sphi 0, %s168
    %s183 = sphi 0, %s169
    %s187 = sphi 0, %s187
    %s189 = sphi 0, %s187
    %s190 = sphi 0, %s189
    %s204 = sphi 0, %s190
    %s208 = sphi 0, %s208
    %s210 = sphi 0, %s208
    %s211 = sphi 0, %s210
    %s225 = sphi 0, %s211
    %s229 = sphi 0, %s229
    %s231 = sphi 0, %s229
    %s232 = sphi 0, %s231
    %s246 = sphi 0, %s232
    %s254 = sphi 0, %s256
    %s257 = sphi 0, %s254
    %s258 = sphi 0, %s257
    %s274 = sphi 0, %s258
  $region4: #{madiff_forward.1} parent=0 // loop_header_branch
    %25 = sbr.rel (%p23) target = $region8
  $region5: #{madiff_forward.1} parent=0 // loop_body
    %s27 = ssub.s32 %s22, 1
    %s28 = ssub.s32 %s22, 2
    %s35 = sadd.s32 1, %s30
    %p36 = scmp.ge.s32.totalorder %s35, 1
    %s37 = scalar_select %p36, 0, %s35
    %s38 = sadd.s32 1, %s29
    %s39 = scalar_select %p36, %s38, %s29
    %p40 = scmp.ge.s32.totalorder %s39, 2
    %s41 = scalar_select %p40, 0, %s39
    %s42 = ssub.s32 %s29, %s41
    %s43 = ssub.s32 %s30, %s37
    %s44 = sor.u32 %s42, %s43
    %p45 = scmp.eq.s32.totalorder %s44, 0
    %s47 = sadd.s32 %s46, 1
    %s48 = scalar_select %p45, %s46, %s47
    %p51 = pneg %p45
    %p52 = scmp.eq.s32.totalorder %s22, 1
    %p53 = por %p51, %p52
    %p54 = scmp.ne.s32.totalorder %s46, %s49
    %p55 = scmp.eq.s32.totalorder %s22, 0
    %p56 = por %p54, %p55
    %p57 = scmp.ne.s32.totalorder %s46, %s49
    %p58 = scmp.eq.s32.totalorder %s27, 1
    %p59 = por %p57, %p58
    %p60 = scmp.ne.s32.totalorder %s49, %s50
    %p61 = scmp.eq.s32.totalorder %s27, 0
    %p62 = por %p60, %p61
    %p63 = scmp.ne.s32.totalorder %s49, %s50
    %p64 = scmp.eq.s32.totalorder %s28, 1
    %p65 = por %p63, %p64
    %p67 = scmp.ne.s32.totalorder %s50, %s66
    %p68 = scmp.eq.s32.totalorder %s28, 0
    %p69 = por %p67, %p68
    %s70 = ssub.s32 %s29, %s41
    %s71 = ssub.s32 %s30, %s37
    %s72 = sor.u32 %s70, %s71
    %p73 = scmp.eq.s32.totalorder %s72, 0
    %s75 = sadd.s32 %s74, 1
    %s76 = scalar_select %p73, %s74, %s75
    %p79 = pneg %p73
    %p80 = scmp.eq.s32.totalorder %s22, 1
    %p81 = por %p79, %p80
    %p82 = scmp.ne.s32.totalorder %s74, %s77
    %p83 = scmp.eq.s32.totalorder %s22, 0
    %p84 = por %p82, %p83
    %p85 = scmp.ne.s32.totalorder %s74, %s77
    %p86 = scmp.eq.s32.totalorder %s27, 1
    %p87 = por %p85, %p86
    %p88 = scmp.ne.s32.totalorder %s77, %s78
    %p89 = scmp.eq.s32.totalorder %s27, 0
    %p90 = por %p88, %p89
    %p91 = scmp.ne.s32.totalorder %s77, %s78
    %p92 = scmp.eq.s32.totalorder %s28, 1
    %p93 = por %p91, %p92
    %p95 = scmp.ne.s32.totalorder %s78, %s94
    %p96 = scmp.eq.s32.totalorder %s28, 0
    %p97 = por %p95, %p96
    %s98 = ssub.s32 %s29, %s41
    %p99 = scmp.eq.s32.totalorder %s98, 0
    %s101 = sadd.s32 %s100, 1
    %s102 = scalar_select %p99, %s100, %s101
    %p105 = pneg %p99
    %p106 = scmp.eq.s32.totalorder %s22, 1
    %p107 = por %p105, %p106
    %p108 = scmp.ne.s32.totalorder %s100, %s103
    %p109 = scmp.eq.s32.totalorder %s22, 0
    %p110 = por %p108, %p109
    %p111 = scmp.ne.s32.totalorder %s100, %s103
    %p112 = scmp.eq.s32.totalorder %s27, 1
    %p113 = por %p111, %p112
    %p114 = scmp.ne.s32.totalorder %s103, %s104
    %p115 = scmp.eq.s32.totalorder %s27, 0
    %p116 = por %p114, %p115
    %p117 = scmp.ne.s32.totalorder %s103, %s104
    %p118 = scmp.eq.s32.totalorder %s28, 1
    %p119 = por %p117, %p118
    %p121 = scmp.ne.s32.totalorder %s104, %s120
    %p122 = scmp.eq.s32.totalorder %s28, 0
    %p123 = por %p121, %p122
    %s125 = sadd.s32 %s124, 1
    %p128 = scmp.eq.s32.totalorder %s22, 1
    %p129 = scmp.ne.s32.totalorder %s124, %s126
    %p130 = scmp.eq.s32.totalorder %s22, 0
    %p131 = por %p129, %p130
    %p132 = scmp.ne.s32.totalorder %s124, %s126
    %p133 = scmp.eq.s32.totalorder %s27, 1
    %p134 = por %p132, %p133
    %p135 = scmp.ne.s32.totalorder %s126, %s127
    %p136 = scmp.eq.s32.totalorder %s27, 0
    %p137 = por %p135, %p136
    %p138 = scmp.ne.s32.totalorder %s126, %s127
    %p139 = scmp.eq.s32.totalorder %s28, 1
    %p140 = por %p138, %p139
    %p142 = scmp.ne.s32.totalorder %s127, %s141
    %p143 = scmp.eq.s32.totalorder %s28, 0
    %p144 = por %p142, %p143
    %s146 = sadd.s32 %s145, 1
    %p149 = scmp.eq.s32.totalorder %s22, 1
    %p150 = scmp.ne.s32.totalorder %s145, %s147
    %p151 = scmp.eq.s32.totalorder %s22, 0
    %p152 = por %p150, %p151
    %p153 = scmp.ne.s32.totalorder %s145, %s147
    %p154 = scmp.eq.s32.totalorder %s27, 1
    %p155 = por %p153, %p154
    %p156 = scmp.ne.s32.totalorder %s147, %s148
    %p157 = scmp.eq.s32.totalorder %s27, 0
    %p158 = por %p156, %p157
    %p159 = scmp.ne.s32.totalorder %s147, %s148
    %p160 = scmp.eq.s32.totalorder %s28, 1
    %p161 = por %p159, %p160
    %p163 = scmp.ne.s32.totalorder %s148, %s162
    %p164 = scmp.eq.s32.totalorder %s28, 0
    %p165 = por %p163, %p164
    %s167 = sadd.s32 %s166, 1
    %p170 = scmp.eq.s32.totalorder %s22, 1
    %p171 = scmp.ne.s32.totalorder %s166, %s168
    %p172 = scmp.eq.s32.totalorder %s22, 0
    %p173 = por %p171, %p172
    %p174 = scmp.ne.s32.totalorder %s166, %s168
    %p175 = scmp.eq.s32.totalorder %s27, 1
    %p176 = por %p174, %p175
    %p177 = scmp.ne.s32.totalorder %s168, %s169
    %p178 = scmp.eq.s32.totalorder %s27, 0
    %p179 = por %p177, %p178
    %p180 = scmp.ne.s32.totalorder %s168, %s169
    %p181 = scmp.eq.s32.totalorder %s28, 1
    %p182 = por %p180, %p181
    %p184 = scmp.ne.s32.totalorder %s169, %s183
    %p185 = scmp.eq.s32.totalorder %s28, 0
    %p186 = por %p184, %p185
    %s188 = sadd.s32 %s187, 1
    %p191 = scmp.eq.s32.totalorder %s22, 1
    %p192 = scmp.ne.s32.totalorder %s187, %s189
    %p193 = scmp.eq.s32.totalorder %s22, 0
    %p194 = por %p192, %p193
    %p195 = scmp.ne.s32.totalorder %s187, %s189
    %p196 = scmp.eq.s32.totalorder %s27, 1
    %p197 = por %p195, %p196
    %p198 = scmp.ne.s32.totalorder %s189, %s190
    %p199 = scmp.eq.s32.totalorder %s27, 0
    %p200 = por %p198, %p199
    %p201 = scmp.ne.s32.totalorder %s189, %s190
    %p202 = scmp.eq.s32.totalorder %s28, 1
    %p203 = por %p201, %p202
    %p205 = scmp.ne.s32.totalorder %s190, %s204
    %p206 = scmp.eq.s32.totalorder %s28, 0
    %p207 = por %p205, %p206
    %s209 = sadd.s32 %s208, 1
    %p212 = scmp.eq.s32.totalorder %s22, 1
    %p213 = scmp.ne.s32.totalorder %s208, %s210
    %p214 = scmp.eq.s32.totalorder %s22, 0
    %p215 = por %p213, %p214
    %p216 = scmp.ne.s32.totalorder %s208, %s210
    %p217 = scmp.eq.s32.totalorder %s27, 1
    %p218 = por %p216, %p217
    %p219 = scmp.ne.s32.totalorder %s210, %s211
    %p220 = scmp.eq.s32.totalorder %s27, 0
    %p221 = por %p219, %p220
    %p222 = scmp.ne.s32.totalorder %s210, %s211
    %p223 = scmp.eq.s32.totalorder %s28, 1
    %p224 = por %p222, %p223
    %p226 = scmp.ne.s32.totalorder %s211, %s225
    %p227 = scmp.eq.s32.totalorder %s28, 0
    %p228 = por %p226, %p227
    %s230 = sadd.s32 %s229, 1
    %p233 = scmp.eq.s32.totalorder %s22, 1
    %p234 = scmp.ne.s32.totalorder %s229, %s231
    %p235 = scmp.eq.s32.totalorder %s22, 0
    %p236 = por %p234, %p235
    %p237 = scmp.ne.s32.totalorder %s229, %s231
    %p238 = scmp.eq.s32.totalorder %s27, 1
    %p239 = por %p237, %p238
    %p240 = scmp.ne.s32.totalorder %s231, %s232
    %p241 = scmp.eq.s32.totalorder %s27, 0
    %p242 = por %p240, %p241
    %p243 = scmp.ne.s32.totalorder %s231, %s232
    %p244 = scmp.eq.s32.totalorder %s28, 1
    %p245 = por %p243, %p244
    %p247 = scmp.ne.s32.totalorder %s232, %s246
    %p248 = scmp.eq.s32.totalorder %s28, 0
    %p249 = por %p247, %p248
    %s250 = ssub.s32 %s29, %s41
    %s251 = ssub.s32 %s30, %s37
    %s252 = sor.u32 %s250, %s251
    %p253 = scmp.eq.s32.totalorder %s252, 0
    %s255 = sadd.s32 %s254, 1
    %s256 = scalar_select %p253, %s254, %s255
    %p259 = pneg %p253
    %p260 = scmp.eq.s32.totalorder %s22, 1
    %p261 = por %p259, %p260
    %p262 = scmp.ne.s32.totalorder %s254, %s257
    %p263 = scmp.eq.s32.totalorder %s22, 0
    %p264 = por %p262, %p263
    %p265 = scmp.ne.s32.totalorder %s254, %s257
    %p266 = scmp.eq.s32.totalorder %s27, 1
    %p267 = por %p265, %p266
    %p268 = scmp.ne.s32.totalorder %s257, %s258
    %p269 = scmp.eq.s32.totalorder %s27, 0
    %p270 = por %p268, %p269
    %p271 = scmp.ne.s32.totalorder %s257, %s258
    %p272 = scmp.eq.s32.totalorder %s28, 1
    %p273 = por %p271, %p272
    %p275 = scmp.ne.s32.totalorder %s258, %s274
    %p276 = scmp.eq.s32.totalorder %s28, 0
    %p277 = por %p275, %p276
    %p278 = scmp.le.s32.totalorder 1, %s22
    %p279 = scmp.lt.s32.totalorder %s22, 3
    %p280 = pnand %p278, %p279
    %p281 = pneg %p280
    // Predicated region
    $region9: #{madiff_forward.1} parent=5 // pred_check
      _
    $region10: #{madiff_forward.1} parent=5 // pred_check_branch
      %283 = sbr.rel (%p280) target = $region12
    $region11: #{madiff_forward.1} parent=5 // pred_region
      %s284 = ssub.s32 %s22, 1
      // Predicated region
      $region13: #{madiff_forward.1} parent=11 // pred_check
        %p285 = pneg %p137
      $region14: #{madiff_forward.1} parent=11 // pred_check_branch
        %287 = sbr.rel (%p285) target = $region16
      $region15: #{madiff_forward.1} parent=11 // pred_region
        _
      $region16: #{madiff_forward.1} parent=11 // pred_fallthru
        _
      // Predicated region
      $region17: #{madiff_forward.1} parent=11 // pred_check
        %p288 = pneg %p158
      $region18: #{madiff_forward.1} parent=11 // pred_check_branch
        %290 = sbr.rel (%p288) target = $region20
      $region19: #{madiff_forward.1} parent=11 // pred_region
        _
      $region20: #{madiff_forward.1} parent=11 // pred_fallthru
        _
      // Predicated region
      $region21: #{madiff_forward.1} parent=11 // pred_check
        %p291 = pneg %p179
      $region22: #{madiff_forward.1} parent=11 // pred_check_branch
        %293 = sbr.rel (%p291) target = $region24
      $region23: #{madiff_forward.1} parent=11 // pred_region
        _
      $region24: #{madiff_forward.1} parent=11 // pred_fallthru
        _
      // Predicated region
      $region25: #{madiff_forward.1} parent=11 // pred_check
        %p294 = pneg %p200
      $region26: #{madiff_forward.1} parent=11 // pred_check_branch
        %296 = sbr.rel (%p294) target = $region28
      $region27: #{madiff_forward.1} parent=11 // pred_region
        _
      $region28: #{madiff_forward.1} parent=11 // pred_fallthru
        _
      // Predicated region
      $region29: #{madiff_forward.1} parent=11 // pred_check
        %p297 = pneg %p221
      $region30: #{madiff_forward.1} parent=11 // pred_check_branch
        %299 = sbr.rel (%p297) target = $region32
      $region31: #{madiff_forward.1} parent=11 // pred_region
        _
      $region32: #{madiff_forward.1} parent=11 // pred_fallthru
        _
      // Predicated region
      $region33: #{madiff_forward.1} parent=11 // pred_check
        %p300 = pneg %p242
      $region34: #{madiff_forward.1} parent=11 // pred_check_branch
        %302 = sbr.rel (%p300) target = $region36
      $region35: #{madiff_forward.1} parent=11 // pred_region
        _
      $region36: #{madiff_forward.1} parent=11 // pred_fallthru
        _
    $region12: #{madiff_forward.1} parent=5 // pred_fallthru
      _
    %p303 = scmp.lt.s32.totalorder %s22, 2
    // Predicated region
    $region37: #{madiff_forward.1} parent=5 // pred_check
      %p304 = pneg %p303
    $region38: #{madiff_forward.1} parent=5 // pred_check_branch
      %306 = sbr.rel (%p304) target = $region40
    $region39: #{madiff_forward.1} parent=5 // pred_region
      // Predicated region
      $region41: #{madiff_forward.1} parent=39 // pred_check
        %p307 = pneg %p56
      $region42: #{madiff_forward.1} parent=39 // pred_check_branch
        %309 = sbr.rel (%p307) target = $region44
      $region43: #{madiff_forward.1} parent=39 // pred_region
        %s310 = smul.u32 2, %s30
        %p311 = scmp.lt.s32.totalorder %s29, 1
        %s312 = scalar_select %p311, %s29, 1
        %p313 = scmp.lt.s32.totalorder %s310, 1
        %s314 = scalar_select %p313, %s310, 1
        %s315 = smul.addr %s312, 4
        %s316 = sadd.s32 %s314, %s315
        %s317 = smul.addr %s316, 8
        %s318 = scalar_lea.vmem %s1, %s317
        %s319 = smul.u32 2, %s30
      $region44: #{madiff_forward.1} parent=39 // pred_fallthru
        _
      // Predicated region
      $region45: #{madiff_forward.1} parent=39 // pred_check
        %p320 = pneg %p84
      $region46: #{madiff_forward.1} parent=39 // pred_check_branch
        %322 = sbr.rel (%p320) target = $region48
      $region47: #{madiff_forward.1} parent=39 // pred_region
        %s323 = smul.u32 2, %s30
        %p324 = scmp.lt.s32.totalorder %s29, 1
        %s325 = scalar_select %p324, %s29, 1
        %p326 = scmp.lt.s32.totalorder %s323, 1
        %s327 = scalar_select %p326, %s323, 1
        %s328 = smul.addr %s325, 2
        %s329 = sadd.s32 %s327, %s328
        %s330 = smul.addr %s329, 8
        %s331 = scalar_lea.vmem %s2, %s330
        %s332 = smul.u32 2, %s30
      $region48: #{madiff_forward.1} parent=39 // pred_fallthru
        _
      // Predicated region
      $region49: #{madiff_forward.1} parent=39 // pred_check
        %p333 = pneg %p110
      $region50: #{madiff_forward.1} parent=39 // pred_check_branch
        %335 = sbr.rel (%p333) target = $region52
      $region51: #{madiff_forward.1} parent=39 // pred_region
        %p336 = scmp.lt.s32.totalorder %s29, 1
        %s337 = scalar_select %p336, %s29, 1
        %s338 = smul.addr %s337, 8
        %s339 = smul.addr %s338, 8
        %s340 = scalar_lea.vmem %s3, %s339
      $region52: #{madiff_forward.1} parent=39 // pred_fallthru
        _
    $region40: #{madiff_forward.1} parent=5 // pred_fallthru
      _
    %p341 = scmp.le.s32.totalorder 1, %s22
    %p342 = scmp.lt.s32.totalorder %s22, 3
    %p343 = pnand %p341, %p342
    %p344 = pneg %p343
    // Predicated region
    $region53: #{madiff_forward.1} parent=5 // pred_check
      _
    $region54: #{madiff_forward.1} parent=5 // pred_check_branch
      %346 = sbr.rel (%p343) target = $region56
    $region55: #{madiff_forward.1} parent=5 // pred_region
      %s347 = ssub.s32 %s22, 1
      %s348 = smul.u32 2, %s32
      %p349 = scmp.lt.s32.totalorder %s31, 1
      %s350 = scalar_select %p349, %s31, 1
      %p351 = scmp.lt.s32.totalorder %s348, 1
      %s352 = scalar_select %p351, %s348, 1
      %s353 = smul.addr %s350, 4
      %s354 = sadd.s32 %s352, %s353
      %s355 = smul.addr %s354, 8
      %s356 = scalar_lea.vmem %s1, %s355
      %p357 = pneg %p62
      %p358 = pneg %p59
      %s359 = smul.u32 2, %s32
      %p360 = scmp.lt.s32.totalorder %s31, 1
      %s361 = scalar_select %p360, %s31, 1
      %p362 = scmp.lt.s32.totalorder %s359, 1
      %s363 = scalar_select %p362, %s359, 1
      %s364 = smul.addr %s361, 2
      %s365 = sadd.s32 %s363, %s364
      %s366 = smul.addr %s365, 8
      %s367 = scalar_lea.vmem %s2, %s366
      %p368 = pneg %p90
      %p369 = pneg %p87
      %p370 = scmp.lt.s32.totalorder %s31, 1
      %s371 = scalar_select %p370, %s31, 1
      %s372 = smul.addr %s371, 8
      %s373 = smul.addr %s372, 8
      %s374 = scalar_lea.vmem %s3, %s373
      %p375 = pneg %p116
      %p376 = pneg %p113
      %p377 = pneg %p137
      %p378 = pneg %p134
      %p379 = pneg %p158
      %p380 = pneg %p155
      %p381 = pneg %p179
      %p382 = pneg %p176
      %p383 = pneg %p200
      %p384 = pneg %p197
      %p385 = pneg %p221
      %p386 = pneg %p218
      %p387 = pneg %p242
      %p388 = pneg %p239
      %p389 = pneg %p270
      %p390 = pneg %p267
      %s391 = smul.u32 2, %s32
      %p392 = scmp.lt.s32.totalorder %s31, 1
      %s393 = scalar_select %p392, %s31, 1
      %p394 = scmp.lt.s32.totalorder %s391, 1
      %s395 = scalar_select %p394, %s391, 1
      %s396 = smul.addr %s393, 2
      %s397 = sadd.s32 %s395, %s396
      %s398 = smul.addr %s397, 8
      %s399 = scalar_lea.vmem %s10, %s398
      %s400 = smul.u32 2, %s32
      %p401 = scmp.lt.s32.totalorder %s31, 1
      %s402 = scalar_select %p401, %s31, 1
      %p403 = scmp.lt.s32.totalorder %s400, 1
      %s404 = scalar_select %p403, %s400, 1
      %s405 = smul.addr %s402, 4
      %s406 = sadd.s32 %s404, %s405
      %s407 = smul.addr %s406, 8
      %s408 = scalar_lea.vmem %s1, %s407
      %s409 = smul.u32 2, %s32
      %s410 = smul.u32 2, %s32
      %p411 = scmp.lt.s32.totalorder %s31, 1
      %s412 = scalar_select %p411, %s31, 1
      %p413 = scmp.lt.s32.totalorder %s410, 1
      %s414 = scalar_select %p413, %s410, 1
      %s415 = smul.addr %s412, 2
      %s416 = sadd.s32 %s414, %s415
      %s417 = smul.addr %s416, 8
      %s418 = scalar_lea.vmem %s2, %s417
      %s419 = smul.u32 2, %s32
      %p420 = scmp.lt.s32.totalorder %s31, 1
      %s421 = scalar_select %p420, %s31, 1
      %s422 = smul.addr %s421, 8
      %s423 = smul.addr %s422, 8
      %s424 = scalar_lea.vmem %s3, %s423
      %s425 = smul.u32 2, %s32
      %p426 = scmp.lt.s32.totalorder %s31, 1
      %s427 = scalar_select %p426, %s31, 1
      %p428 = scmp.lt.s32.totalorder %s425, 1
      %s429 = scalar_select %p428, %s425, 1
      %s430 = smul.addr %s427, 2
      %s431 = sadd.s32 %s429, %s430
      %s432 = smul.addr %s431, 8
      %s433 = scalar_lea.vmem %s10, %s432
      %s434 = smul.u32 2, %s32
      %v436 = vld [vmem:[%s408] sm:$0xff]
      %v437 = vld [vmem:[%s408 + $0x8] sm:$0xff]
      %v438 = vld [vmem:[%s408 + $0x10] sm:$0x1]
      %v439 = vld [vmem:[%s408 + $0x18] sm:$0x1]
      %v440 = vld [vmem:[%s4] sm:$0xff]
      %v441 = vld [vmem:[%s4 + $0x8] sm:$0xff]
      %v442 = vld [vmem:[%s5] sm:$0xff]
      %v443 = vld [vmem:[%s5 + $0x8] sm:$0xff]
      %445 = vset.pattern.permute.xlu0 0
      %446 = vperm.xlu0 %445, %v442
      %v447 = vpop.permute.xlu0 %446
      %450 = vset.pattern.permute.xlu0 0
      %451 = vperm.xlu0 %450, %v443
      %v452 = vpop.permute.xlu0 %451
      %vm454 = vcmask 72704
      %v456 = vsel %vm454, %v440, 0
      %v459 = vsel %vm454, %v441, 0
      %vm461 = vcmask 1040384
      %v463 = vsel %vm461, %v438, 0
      %v466 = vsel %vm461, %v439, 0
      %468 = vmatprep.subr.mxu0 0.0
      %469 = vmatpush1.msra.mxu0 0.0
      %470 = vmatprep.subr.mxu0 0.0
      %471 = vmatpush1.msra.mxu0 0.0
      %472 = vmatprep.subr.mxu0 0.0
      %473 = vmatpush1.msra.mxu0 0.0
      %474 = vmatprep.subr.mxu0 0.0
      %475 = vmatpush1.msra.mxu0 0.0
      %476 = vmatprep.subr.mxu0 0.0
      %477 = vmatpush1.msra.mxu0 0.0
      %478 = vmatprep.subr.mxu0 0.0
      %479 = vmatpush1.msra.mxu0 0.0
      %480 = vmatprep.subr.mxu0 0.0
      %481 = vmatpush1.msra.mxu0 0.0
      %482 = vmatprep.subr.mxu0 0.0
      %483 = vmatpush1.msra.mxu0 0.0
      %484 = vmatprep.subr.mxu0 0.0
      %485 = vmatpush1.msra.mxu0 0.0
      %486 = vmatprep.subr.mxu0 0.0
      %487 = vmatpush1.msra.mxu0 0.0
      %488 = vmatprep.subr.mxu0 0.0
      %489 = vmatpush1.msra.mxu0 0.0
      %490 = vmatprep.subr.mxu0 0.0
      %491 = vmatpush1.msra.mxu0 0.0
      %492 = vmatprep.subr.mxu0 0.0
      %493 = vmatpush1.msra.mxu0 0.0
      %494 = vmatprep.subr.mxu0 0.0
      %495 = vmatpush1.msra.mxu0 0.0
      %496 = vmatprep.subr.mxu0 %v466
      %497 = vmatpush1.msra.mxu0 %v463
      %498 = vmatprep.subr.mxu0 %v437
      %499 = vmatpush1.msra.mxu0 %v436
      %500 = vmatprep.subr.mxu0 0.0
      %501 = vmatpush2.msra.mxu0 0.0
      %502 = vmatprep.subr.mxu0 0.0
      %503 = vmatpush2.msra.mxu0 0.0
      %504 = vmatprep.subr.mxu0 0.0
      %505 = vmatpush2.msra.mxu0 0.0
      %506 = vmatprep.subr.mxu0 0.0
      %507 = vmatpush2.msra.mxu0 0.0
      %508 = vmatprep.subr.mxu0 0.0
      %509 = vmatpush2.msra.mxu0 0.0
      %510 = vmatprep.subr.mxu0 0.0
      %511 = vmatpush2.msra.mxu0 0.0
      %512 = vmatprep.subr.mxu0 0.0
      %513 = vmatpush2.msra.mxu0 0.0
      %514 = vmatprep.subr.mxu0 0.0
      %515 = vmatpush2.msra.mxu0 0.0
      %516 = vmatprep.subr.mxu0 0.0
      %517 = vmatpush2.msra.mxu0 0.0
      %518 = vmatprep.subr.mxu0 0.0
      %519 = vmatpush2.msra.mxu0 0.0
      %520 = vmatprep.subr.mxu0 0.0
      %521 = vmatpush2.msra.mxu0 0.0
      %522 = vmatprep.subr.mxu0 0.0
      %523 = vmatpush2.msra.mxu0 0.0
      %524 = vmatprep.subr.mxu0 0.0
      %525 = vmatpush2.msra.mxu0 0.0
      %526 = vmatprep.subr.mxu0 0.0
      %527 = vmatpush2.msra.mxu0 0.0
      %528 = vmatprep.subr.mxu0 0.0
      %529 = vmatpush2.msra.mxu0 0.0
      %530 = vmatprep.subr.mxu0 0.0
      %531 = vmatpush2.msra.mxu0 0.0
      %532 = vmatprep.mubr.f32.mxu0 0.0
      %533 = vmatmul.mubr.f32.gmra.mxu0 %v456
      %v534 = vpop.f32.mrf.mxu0
      %v535 = vadd.f32 %v447, %v534
      %v536 = vpop.f32.mrf.mxu0
      %v537 = vadd.f32 %v447, %v536
      %538 = vmatprep.mubr.f32.mxu0 0.0
      %539 = vmatmul.mubr.f32.gmra.mxu0 %v459
      %v540 = vpop.f32.mrf.mxu0
      %v541 = vadd.f32 %v452, %v540
      %v542 = vpop.f32.mrf.mxu0
      %v543 = vadd.f32 %v452, %v542
      %544 = vdwg.mxu0
      %s545 = sld [smem:[#allocation3 + %s31]]
      %s546 = sshra.s32 %s31, 7
      %s547 = sand.u32 %s31, 127
      %s548 = sadd.s32 %s546, 1
      %s549 = smul.u32 %s548, 128
      %s550 = sshra.s32 %s31, 7
      %s551 = sand.u32 %s31, 127
      %s552 = sadd.s32 %s549, %s551
      %s553 = sld [smem:[#allocation3 + %s552]]
      %v554 = vstv %s545
      %v555 = vmul.f32 %v554, %v535
      %v556 = vmul.f32 %v554, %v537
      %v557 = vld [vmem:[%s418] sm:$0xff]
      %v558 = vld [vmem:[%s418 + $0x8] sm:$0xff]
      %v559 = vstv %s553
      %v560 = vmul.f32 %v559, %v557
      %v561 = vmul.f32 %v559, %v558
      %v562 = vadd.f32 %v555, %v560
      %v563 = vadd.f32 %v556, %v561
      %v564 = vpack.c.bf16 %v535, %v562
      %v565 = vpack.c.bf16 %v537, %v563
      %v566 = vpack.c.bf16 %v541, %v541
      %v567 = vpack.c.bf16 %v543, %v543
      %v568 = vld [vmem:[%s6] sm:$0xf]
      %v569 = vld [vmem:[%s6 + $0x4] sm:$0xf]
      %v570 = vld [vmem:[%s6 + $0x8] sm:$0xf]
      %v571 = vld [vmem:[%s6 + $0xc] sm:$0xf]
      %v572 = vld [vmem:[%s6 + $0x10] sm:$0xf]
      %v573 = vld [vmem:[%s6 + $0x14] sm:$0xf]
      %v574 = vld [vmem:[%s6 + $0x18] sm:$0xf]
      %v575 = vld [vmem:[%s6 + $0x1c] sm:$0xf]
      %v576 = vld [vmem:[%s7] sm:$0xf]
      %v577 = vld [vmem:[%s7 + $0x4] sm:$0xf]
      %v578 = vld [vmem:[%s7 + $0x8] sm:$0xf]
      %v579 = vld [vmem:[%s7 + $0xc] sm:$0xf]
      %v580 = vld [vmem:[%s7 + $0x10] sm:$0xf]
      %v581 = vld [vmem:[%s7 + $0x14] sm:$0xf]
      %v582 = vld [vmem:[%s7 + $0x18] sm:$0xf]
      %v583 = vld [vmem:[%s7 + $0x1c] sm:$0xf]
      %v584 = vpack.c.bf16 %v438, %v436
      %v585 = vpack.c.bf16 %v439, %v437
      %v594 = vunpack.c.l.b16 %v576
      %v595 = vunpack.c.l.b16 %v577
      %v596 = vunpack.c.l.b16 %v578
      %v597 = vunpack.c.l.b16 %v579
      %v598 = vunpack.c.l.b16 %v580
      %v599 = vunpack.c.l.b16 %v581
      %v600 = vunpack.c.l.b16 %v582
      %v601 = vunpack.c.l.b16 %v583
      %v602 = vpack.c.b16 %v595, %v594
      %v603 = vpack.c.b16 %v597, %v596
      %v604 = vpack.c.b16 %v599, %v598
      %v605 = vpack.c.b16 %v601, %v600
      %v607 = vsel %vm454, %v602, 0
      %v610 = vsel %vm454, %v603, 0
      %v613 = vsel %vm454, %v604, 0
      %v616 = vsel %vm454, %v605, 0
      %vm618 = vcmask 1043456
      %vm619 = vcmask 1044480
      %v620 = vsel %vm618, 4294967295, 65535
      %v621 = vsel %vm619, %v620, 0
      %v623 = vand.u32 %v584, %v621
      %v626 = vand.u32 %v585, %v621
      %628 = vmatprep.subr.bf16.mxu0 0
      %629 = vmatpush1.bf16.msra.mxu0 0
      %630 = vmatprep.subr.bf16.mxu0 0
      %631 = vmatpush1.bf16.msra.mxu0 0
      %632 = vmatprep.subr.bf16.mxu0 0
      %633 = vmatpush1.bf16.msra.mxu0 0
      %634 = vmatprep.subr.bf16.mxu0 0
      %635 = vmatpush1.bf16.msra.mxu0 0
      %636 = vmatprep.subr.bf16.mxu0 0
      %637 = vmatpush1.bf16.msra.mxu0 0
      %638 = vmatprep.subr.bf16.mxu0 0
      %639 = vmatpush1.bf16.msra.mxu0 0
      %640 = vmatprep.subr.bf16.mxu0 0
      %641 = vmatpush1.bf16.msra.mxu0 0
      %642 = vmatprep.subr.bf16.mxu0 %v626
      %643 = vmatpush1.bf16.msra.mxu0 %v623
      %644 = vmatprep.subr.bf16.mxu0 0
      %645 = vmatpush2.bf16.msra.mxu0 0
      %646 = vmatprep.subr.bf16.mxu0 0
      %647 = vmatpush2.bf16.msra.mxu0 0
      %648 = vmatprep.subr.bf16.mxu0 0
      %649 = vmatpush2.bf16.msra.mxu0 0
      %650 = vmatprep.subr.bf16.mxu0 0
      %651 = vmatpush2.bf16.msra.mxu0 0
      %652 = vmatprep.subr.bf16.mxu0 0
      %653 = vmatpush2.bf16.msra.mxu0 0
      %654 = vmatprep.subr.bf16.mxu0 0
      %655 = vmatpush2.bf16.msra.mxu0 0
      %656 = vmatprep.subr.bf16.mxu0 0
      %657 = vmatpush2.bf16.msra.mxu0 0
      %658 = vmatprep.subr.bf16.mxu0 0
      %659 = vmatpush2.bf16.msra.mxu0 0
      %660 = vmatprep.mubr.bf16.mxu0 0
      %661 = vmatmul.mubr.bf16.gmra.mxu0 %v607
      %v662 = vpop.f32.mrf.mxu0
      %v663 = vadd.f32 0.0, %v662
      %v664 = vpop.f32.mrf.mxu0
      %v665 = vadd.f32 0.0, %v664
      %v666 = vpop.f32.mrf.mxu0
      %v667 = vadd.f32 0.0, %v666
      %v668 = vpop.f32.mrf.mxu0
      %v669 = vadd.f32 0.0, %v668
      %670 = vmatprep.mubr.bf16.mxu0 0
      %671 = vmatmul.mubr.bf16.gmra.mxu0 %v610
      %v672 = vpop.f32.mrf.mxu0
      %v673 = vadd.f32 0.0, %v672
      %v674 = vpop.f32.mrf.mxu0
      %v675 = vadd.f32 0.0, %v674
      %v676 = vpop.f32.mrf.mxu0
      %v677 = vadd.f32 0.0, %v676
      %v678 = vpop.f32.mrf.mxu0
      %v679 = vadd.f32 0.0, %v678
      %680 = vmatprep.mubr.bf16.mxu0 0
      %681 = vmatmul.mubr.bf16.gmra.mxu0 %v613
      %v682 = vpop.f32.mrf.mxu0
      %v683 = vadd.f32 0.0, %v682
      %v684 = vpop.f32.mrf.mxu0
      %v685 = vadd.f32 0.0, %v684
      %v686 = vpop.f32.mrf.mxu0
      %v687 = vadd.f32 0.0, %v686
      %v688 = vpop.f32.mrf.mxu0
      %v689 = vadd.f32 0.0, %v688
      %690 = vmatprep.mubr.bf16.mxu0 0
      %691 = vmatmul.mubr.bf16.gmra.mxu0 %v616
      %v692 = vpop.f32.mrf.mxu0
      %v693 = vadd.f32 0.0, %v692
      %v694 = vpop.f32.mrf.mxu0
      %v695 = vadd.f32 0.0, %v694
      %v696 = vpop.f32.mrf.mxu0
      %v697 = vadd.f32 0.0, %v696
      %v698 = vpop.f32.mrf.mxu0
      %v699 = vadd.f32 0.0, %v698
      %700 = vdwg.mxu0
      %v709 = vunpack.c.l.b16 %v568
      %v710 = vunpack.c.l.b16 %v569
      %v711 = vunpack.c.l.b16 %v570
      %v712 = vunpack.c.l.b16 %v571
      %v713 = vunpack.c.l.b16 %v572
      %v714 = vunpack.c.l.b16 %v573
      %v715 = vunpack.c.l.b16 %v574
      %v716 = vunpack.c.l.b16 %v575
      %v717 = vpack.c.b16 %v710, %v709
      %v718 = vpack.c.b16 %v712, %v711
      %v719 = vpack.c.b16 %v714, %v713
      %v720 = vpack.c.b16 %v716, %v715
      %vm721 = vcmask 195584
      %v723 = vsel %vm721, %v717, 0
      %v726 = vsel %vm721, %v718, 0
      %v729 = vsel %vm721, %v719, 0
      %v732 = vsel %vm721, %v720, 0
      %v735 = vsel %vm618, %v566, 0
      %v738 = vsel %vm618, %v567, 0
      %740 = vmatprep.subr.bf16.mxu0 0
      %741 = vmatpush1.bf16.msra.mxu0 0
      %742 = vmatprep.subr.bf16.mxu0 0
      %743 = vmatpush1.bf16.msra.mxu0 0
      %744 = vmatprep.subr.bf16.mxu0 0
      %745 = vmatpush1.bf16.msra.mxu0 0
      %746 = vmatprep.subr.bf16.mxu0 0
      %747 = vmatpush1.bf16.msra.mxu0 0
      %748 = vmatprep.subr.bf16.mxu0 0
      %749 = vmatpush1.bf16.msra.mxu0 0
      %750 = vmatprep.subr.bf16.mxu0 0
      %751 = vmatpush1.bf16.msra.mxu0 0
      %752 = vmatprep.subr.bf16.mxu0 %v738
      %753 = vmatpush1.bf16.msra.mxu0 %v735
      %754 = vmatprep.subr.bf16.mxu0 %v565
      %755 = vmatpush1.bf16.msra.mxu0 %v564
      %756 = vmatprep.subr.bf16.mxu0 0
      %757 = vmatpush2.bf16.msra.mxu0 0
      %758 = vmatprep.subr.bf16.mxu0 0
      %759 = vmatpush2.bf16.msra.mxu0 0
      %760 = vmatprep.subr.bf16.mxu0 0
      %761 = vmatpush2.bf16.msra.mxu0 0
      %762 = vmatprep.subr.bf16.mxu0 0
      %763 = vmatpush2.bf16.msra.mxu0 0
      %764 = vmatprep.subr.bf16.mxu0 0
      %765 = vmatpush2.bf16.msra.mxu0 0
      %766 = vmatprep.subr.bf16.mxu0 0
      %767 = vmatpush2.bf16.msra.mxu0 0
      %768 = vmatprep.subr.bf16.mxu0 0
      %769 = vmatpush2.bf16.msra.mxu0 0
      %770 = vmatprep.subr.bf16.mxu0 0
      %771 = vmatpush2.bf16.msra.mxu0 0
      %772 = vmatprep.mubr.bf16.mxu0 0
      %773 = vmatmul.mubr.bf16.gmra.mxu0 %v723
      %v774 = vpop.f32.mrf.mxu0
      %v775 = vadd.f32 %v663, %v774
      %v776 = vpop.f32.mrf.mxu0
      %v777 = vadd.f32 %v665, %v776
      %v778 = vpop.f32.mrf.mxu0
      %v779 = vadd.f32 %v667, %v778
      %v780 = vpop.f32.mrf.mxu0
      %v781 = vadd.f32 %v669, %v780
      %782 = vmatprep.mubr.bf16.mxu0 0
      %783 = vmatmul.mubr.bf16.gmra.mxu0 %v726
      %v784 = vpop.f32.mrf.mxu0
      %v785 = vadd.f32 %v673, %v784
      %v786 = vpop.f32.mrf.mxu0
      %v787 = vadd.f32 %v675, %v786
      %v788 = vpop.f32.mrf.mxu0
      %v789 = vadd.f32 %v677, %v788
      %v790 = vpop.f32.mrf.mxu0
      %v791 = vadd.f32 %v679, %v790
      %792 = vmatprep.mubr.bf16.mxu0 0
      %793 = vmatmul.mubr.bf16.gmra.mxu0 %v729
      %v794 = vpop.f32.mrf.mxu0
      %v795 = vadd.f32 %v683, %v794
      %v796 = vpop.f32.mrf.mxu0
      %v797 = vadd.f32 %v685, %v796
      %v798 = vpop.f32.mrf.mxu0
      %v799 = vadd.f32 %v687, %v798
      %v800 = vpop.f32.mrf.mxu0
      %v801 = vadd.f32 %v689, %v800
      %802 = vmatprep.mubr.bf16.mxu0 0
      %803 = vmatmul.mubr.bf16.gmra.mxu0 %v732
      %v804 = vpop.f32.mrf.mxu0
      %v805 = vadd.f32 %v693, %v804
      %v806 = vpop.f32.mrf.mxu0
      %v807 = vadd.f32 %v695, %v806
      %v808 = vpop.f32.mrf.mxu0
      %v809 = vadd.f32 %v697, %v808
      %v810 = vpop.f32.mrf.mxu0
      %v811 = vadd.f32 %v699, %v810
      %812 = vdwg.mxu0
      %v813 = vld [vmem:[%s424] sm:$0xff]
      %v814 = vld [vmem:[%s424 + $0x8] sm:$0xff]
      %v815 = vld [vmem:[%s424 + $0x10] sm:$0xff]
      %v816 = vld [vmem:[%s424 + $0x18] sm:$0xff]
      %v817 = vld [vmem:[%s424 + $0x20] sm:$0xff]
      %v818 = vld [vmem:[%s424 + $0x28] sm:$0xff]
      %v819 = vld [vmem:[%s424 + $0x30] sm:$0xff]
      %v820 = vld [vmem:[%s424 + $0x38] sm:$0xff]
      %822 = vset.pattern.permute.xlu0 0
      %823 = vperm.xlu0 %822, %v813
      %v824 = vpop.permute.xlu0 %823
      %827 = vset.pattern.permute.xlu0 0
      %828 = vperm.xlu0 %827, %v814
      %v829 = vpop.permute.xlu0 %828
      %832 = vset.pattern.permute.xlu0 0
      %833 = vperm.xlu0 %832, %v815
      %v834 = vpop.permute.xlu0 %833
      %837 = vset.pattern.permute.xlu0 0
      %838 = vperm.xlu0 %837, %v816
      %v839 = vpop.permute.xlu0 %838
      %842 = vset.pattern.permute.xlu0 0
      %843 = vperm.xlu0 %842, %v817
      %v844 = vpop.permute.xlu0 %843
      %847 = vset.pattern.permute.xlu0 0
      %848 = vperm.xlu0 %847, %v818
      %v849 = vpop.permute.xlu0 %848
      %852 = vset.pattern.permute.xlu0 0
      %853 = vperm.xlu0 %852, %v819
      %v854 = vpop.permute.xlu0 %853
      %857 = vset.pattern.permute.xlu0 0
      %858 = vperm.xlu0 %857, %v820
      %v859 = vpop.permute.xlu0 %858
      %v861 = vadd.f32 %v775, %v824
      %v862 = vadd.f32 %v777, %v824
      %v863 = vadd.f32 %v779, %v829
      %v864 = vadd.f32 %v781, %v829
      %v865 = vadd.f32 %v785, %v834
      %v866 = vadd.f32 %v787, %v834
      %v867 = vadd.f32 %v789, %v839
      %v868 = vadd.f32 %v791, %v839
      %v869 = vadd.f32 %v795, %v844
      %v870 = vadd.f32 %v797, %v844
      %v871 = vadd.f32 %v799, %v849
      %v872 = vadd.f32 %v801, %v849
      %v873 = vadd.f32 %v805, %v854
      %v874 = vadd.f32 %v807, %v854
      %v875 = vadd.f32 %v809, %v859
      %v876 = vadd.f32 %v811, %v859
      %v877 = vmax.f32 %v861, 0.0
      %v878 = vmax.f32 %v862, 0.0
      %v879 = vmax.f32 %v863, 0.0
      %v880 = vmax.f32 %v864, 0.0
      %v881 = vmax.f32 %v865, 0.0
      %v882 = vmax.f32 %v866, 0.0
      %v883 = vmax.f32 %v867, 0.0
      %v884 = vmax.f32 %v868, 0.0
      %v885 = vmax.f32 %v869, 0.0
      %v886 = vmax.f32 %v870, 0.0
      %v887 = vmax.f32 %v871, 0.0
      %v888 = vmax.f32 %v872, 0.0
      %v889 = vmax.f32 %v873, 0.0
      %v890 = vmax.f32 %v874, 0.0
      %v891 = vmax.f32 %v875, 0.0
      %v892 = vmax.f32 %v876, 0.0
      %v893 = vld [vmem:[%s8] sm:$0xf]
      %v894 = vpack.c.bf16 %v879, %v877
      %v895 = vpack.c.bf16 %v880, %v878
      %v896 = vpack.c.bf16 %v883, %v881
      %v897 = vpack.c.bf16 %v884, %v882
      %v898 = vpack.c.bf16 %v887, %v885
      %v899 = vpack.c.bf16 %v888, %v886
      %v900 = vpack.c.bf16 %v891, %v889
      %v901 = vpack.c.bf16 %v892, %v890
      %v902 = vld [vmem:[%s9] sm:$0xff]
      %904 = vset.pattern.permute.xlu0 0
      %905 = vperm.xlu0 %904, %v902
      %v906 = vpop.permute.xlu0 %905
      %vm908 = vcmask 523264
      %v910 = vsel %vm908, %v893, 0
      %912 = vmatprep.subr.bf16.mxu0 0
      %913 = vmatpush1.bf16.msra.mxu0 0
      %914 = vmatprep.subr.bf16.mxu0 0
      %915 = vmatpush1.bf16.msra.mxu0 0
      %916 = vmatprep.subr.bf16.mxu0 0
      %917 = vmatpush1.bf16.msra.mxu0 0
      %918 = vmatprep.subr.bf16.mxu0 0
      %919 = vmatpush1.bf16.msra.mxu0 0
      %920 = vmatprep.subr.bf16.mxu0 %v901
      %921 = vmatpush1.bf16.msra.mxu0 %v900
      %922 = vmatprep.subr.bf16.mxu0 %v899
      %923 = vmatpush1.bf16.msra.mxu0 %v898
      %924 = vmatprep.subr.bf16.mxu0 %v897
      %925 = vmatpush1.bf16.msra.mxu0 %v896
      %926 = vmatprep.subr.bf16.mxu0 %v895
      %927 = vmatpush1.bf16.msra.mxu0 %v894
      %928 = vmatprep.subr.bf16.mxu0 0
      %929 = vmatpush2.bf16.msra.mxu0 0
      %930 = vmatprep.subr.bf16.mxu0 0
      %931 = vmatpush2.bf16.msra.mxu0 0
      %932 = vmatprep.subr.bf16.mxu0 0
      %933 = vmatpush2.bf16.msra.mxu0 0
      %934 = vmatprep.subr.bf16.mxu0 0
      %935 = vmatpush2.bf16.msra.mxu0 0
      %936 = vmatprep.subr.bf16.mxu0 0
      %937 = vmatpush2.bf16.msra.mxu0 0
      %938 = vmatprep.subr.bf16.mxu0 0
      %939 = vmatpush2.bf16.msra.mxu0 0
      %940 = vmatprep.subr.bf16.mxu0 0
      %941 = vmatpush2.bf16.msra.mxu0 0
      %942 = vmatprep.subr.bf16.mxu0 0
      %943 = vmatpush2.bf16.msra.mxu0 0
      %944 = vmatprep.mubr.bf16.mxu0 0
      %945 = vmatmul.mubr.bf16.gmra.mxu0 %v910
      %v946 = vpop.f32.mrf.mxu0
      %v947 = vadd.f32 %v906, %v946
      %v948 = vpop.f32.mrf.mxu0
      %v949 = vadd.f32 %v906, %v948
      %v950 = vpop.f32.mrf.mxu0
      %v951 = vpop.f32.mrf.mxu0
      %952 = vdwg.mxu0
      %953 = vst [vmem:[%s433] sm:$0xff] %v947
      %954 = vst [vmem:[%s433 + $0x8] sm:$0xff] %v949
      %s955 = smul.u32 2, %s32
      %p956 = scmp.lt.s32.totalorder %s31, 1
      %s957 = scalar_select %p956, %s31, 1
      %p958 = scmp.lt.s32.totalorder %s955, 1
      %s959 = scalar_select %p958, %s955, 1
      %s960 = smul.addr %s957, 2
      %s961 = sadd.s32 %s959, %s960
      %s962 = smul.addr %s961, 8
      %s963 = scalar_lea.vmem %s10, %s962
      // Predicated region
      $region57: #{madiff_forward.1} parent=55 // pred_check
        %p964 = pneg %p267
      $region58: #{madiff_forward.1} parent=55 // pred_check_branch
        %966 = sbr.rel (%p964) target = $region60
      $region59: #{madiff_forward.1} parent=55 // pred_region
        %s967 = smul.u32 2, %s32
      $region60: #{madiff_forward.1} parent=55 // pred_fallthru
        _
    $region56: #{madiff_forward.1} parent=5 // pred_fallthru
      _
    %p968 = scmp.le.s32.totalorder 2, %s22
    // Predicated region
    $region61: #{madiff_forward.1} parent=5 // pred_check
      %p969 = pneg %p968
    $region62: #{madiff_forward.1} parent=5 // pred_check_branch
      %971 = sbr.rel (%p969) target = $region64
    $region63: #{madiff_forward.1} parent=5 // pred_region
      %s972 = ssub.s32 %s22, 2
      // Predicated region
      $region65: #{madiff_forward.1} parent=63 // pred_check
        %p973 = pneg %p273
      $region66: #{madiff_forward.1} parent=63 // pred_check_branch
        %975 = sbr.rel (%p973) target = $region68
      $region67: #{madiff_forward.1} parent=63 // pred_region
        %s976 = smul.u32 2, %s34
        %p977 = scmp.lt.s32.totalorder %s33, 1
        %s978 = scalar_select %p977, %s33, 1
        %p979 = scmp.lt.s32.totalorder %s976, 1
        %s980 = scalar_select %p979, %s976, 1
        %s981 = smul.addr %s978, 2
        %s982 = sadd.s32 %s980, %s981
        %s983 = smul.addr %s982, 8
        %s984 = scalar_lea.vmem %s10, %s983
      $region68: #{madiff_forward.1} parent=63 // pred_fallthru
        _
    $region64: #{madiff_forward.1} parent=5 // pred_fallthru
      _
  $region6: #{madiff_forward.1} parent=0 // loop_footer
    %s26 = sadd.s32 1, %s22
  $region7: #{madiff_forward.1} parent=0 // loop_footer_branch
    %21 = sbr.rel target = $region3
  $region8: #{madiff_forward.1} parent=0 // loop_exit
    _

</llo_original>
